<compile_context>
chip_gen: v5e
topology: v5e:2x2
jax: 0.10.0
libtpu: 0.0.40
codegen_flags: <defaults>
</compile_context>

<pallas_src>
import jax
import jax.numpy as jnp
from jax import lax
from jax.experimental import pallas as pl
from jax.experimental.pallas import tpu as pltpu


def _round_up(n, m):
    return ((n + m - 1) // m) * m


def _choose_batch_tiling(B, max_batch_tile):
    """Pick (tile_b, b_pad): sublane-aligned tile, >=2 grid steps when B > 8."""
    b8 = max(_round_up(B, 8), 8)
    if b8 <= 8:
        tile_b = 8
    else:
        # Aim for at least 2 grid points so the "parallel" batch axis can be
        # sharded across both TensorCores on v7x; cap for VMEM headroom.
        tile_b = min(_round_up(pl.cdiv(b8, 2), 8), max_batch_tile)
    b_pad = _round_up(b8, tile_b)
    return tile_b, b_pad


# Budget: largest per-tile buffers at tile_b=2048 are the double-buffered
# flattened x block (2 * 2048 * 64 * 4B = 1 MiB) and output block (0.5 MiB),
# far under v7x's 32 MiB scoped default / 64 MiB physical ceiling.
_VMEM_LIMIT_BYTES = 32 * 1024 * 1024


# ----------------------------- linear=True path -----------------------------
def mlp_kernel(x_ref, w1_ref, b1_ref, w2_ref, b2_ref, w3_ref, b3_ref, o_ref):
    x = x_ref[...]
    h1 = jnp.maximum(
        jnp.dot(x, w1_ref[...], preferred_element_type=jnp.float32) + b1_ref[...],
        0.0)
    h2 = jnp.maximum(
        jnp.dot(h1, w2_ref[...], preferred_element_type=jnp.float32) + b2_ref[...],
        0.0)
    o_ref[...] = (
        jnp.dot(h2, w3_ref[...], preferred_element_type=jnp.float32) + b3_ref[...]
    ).astype(o_ref.dtype)


def mlp_forward(x, params, max_batch_tile=2048):
    B, OBS = x.shape
    H = params["w1"].shape[0]
    A = params["w3"].shape[0]

    tile_b, b_pad = _choose_batch_tiling(B, max_batch_tile)
    if b_pad != B:
        x = jnp.pad(x, ((0, b_pad - B), (0, 0)))

    args = (
        x,
        params["w1"].T, params["b1"][None, :],
        params["w2"].T, params["b2"][None, :],
        params["w3"].T, params["b3"][None, :],
    )
    grid_spec = pltpu.PrefetchScalarGridSpec(
        num_scalar_prefetch=0,
        grid=(b_pad // tile_b,),
        in_specs=[
            pl.BlockSpec((tile_b, OBS), lambda i: (i, 0)),
            pl.BlockSpec((OBS, H), lambda i: (0, 0)),
            pl.BlockSpec((1, H), lambda i: (0, 0)),
            pl.BlockSpec((H, H), lambda i: (0, 0)),
            pl.BlockSpec((1, H), lambda i: (0, 0)),
            pl.BlockSpec((H, A), lambda i: (0, 0)),
            pl.BlockSpec((1, A), lambda i: (0, 0)),
        ],
        out_specs=pl.BlockSpec((tile_b, A), lambda i: (i, 0)),
    )
    out = pl.pallas_call(
        mlp_kernel,
        out_shape=jax.ShapeDtypeStruct((b_pad, A), jnp.float32),
        grid_spec=grid_spec,
        compiler_params=pltpu.CompilerParams(
            dimension_semantics=("parallel",),
            vmem_limit_bytes=_VMEM_LIMIT_BYTES),
    )(*args)
    return out[:B]


# ----------------------------- linear=False (LSTM) path ---------------------
def lstm_fc_kernel(x_ref, wih_ref, whh_ref, b_ref, wfc_ref, bfc_ref, o_ref):
    Bt = x_ref.shape[0]
    OBS = wih_ref.shape[0]
    H = whh_ref.shape[0]
    T = x_ref.shape[1] // OBS

    # Hoisted loop-invariant loads; weights stay register/VMEM-resident
    # across the fully-unrolled recurrence.
    wih = wih_ref[...]            # (OBS, 4H)
    whh = whh_ref[...]            # (H, 4H)
    b = b_ref[...]                # (1, 4H)  fused b_ih + b_hh
    wfc = wfc_ref[...]            # (H, A)
    bfc = bfc_ref[...]            # (1, A)

    h = jnp.zeros((Bt, H), jnp.float32)
    c = jnp.zeros((Bt, H), jnp.float32)

    # Fully-unrolled recurrence (T static & small). PyTorch gate order
    # i, f, g, o; fused 4H gate matmul (4H = 128 fills v5e's MXU in N).
    # Note: at large tile_b this loop is EUP-bound (5 transcendentals/elem),
    # not MXU-bound, so no further MXU-side tuning is attempted here.
    ys = []
    for t in range(T):
        x_t = x_ref[:, t * OBS:(t + 1) * OBS]              # static lane slice
        z = (jnp.dot(x_t, wih, preferred_element_type=jnp.float32)
             + jnp.dot(h, whh, preferred_element_type=jnp.float32)
             + b)                                          # (Bt, 4H)
        i = jax.nn.sigmoid(z[:, 0 * H:1 * H])
        f = jax.nn.sigmoid(z[:, 1 * H:2 * H])
        g = jnp.tanh(z[:, 2 * H:3 * H])
        o = jax.nn.sigmoid(z[:, 3 * H:4 * H])
        c = f * c + i * g
        h = o * jnp.tanh(c)
        # Final fc on the register-resident h_t (no scratch round-trip).
        ys.append(jnp.dot(h, wfc, preferred_element_type=jnp.float32) + bfc)

    # One lane-dense contiguous (Bt, T*A) store instead of T masked stores.
    o_ref[...] = jnp.concatenate(ys, axis=-1).astype(o_ref.dtype)


def lstm_forward(x, params, max_batch_tile=2048):
    B, T, OBS = x.shape
    H = params["w_hh"].shape[1]
    A = params["w_fc"].shape[0]
    GH = 4 * H

    # Flatten time into the lane dim (free row-major reshape): the kernel
    # sees lane-dense (tile_b, T*OBS) inputs and (tile_b, T*A) outputs.
    x_flat = x.reshape(B, T * OBS)

    tile_b, b_pad = _choose_batch_tiling(B, max_batch_tile)
    if b_pad != B:
        x_flat = jnp.pad(x_flat, ((0, b_pad - B), (0, 0)))

    bias = (params["b_ih"] + params["b_hh"])[None, :]      # (1, 4H)
    args = (
        x_flat,                   # (b_pad, T*obs)
        params["w_ih"].T,         # (obs, 4H)
        params["w_hh"].T,         # (H, 4H)
        bias,                     # (1, 4H)
        params["w_fc"].T,         # (H, A)
        params["b_fc"][None, :],  # (1, A)
    )
    grid_spec = pltpu.PrefetchScalarGridSpec(
        num_scalar_prefetch=0,
        grid=(b_pad // tile_b,),
        in_specs=[
            pl.BlockSpec((tile_b, T * OBS), lambda i: (i, 0)),
            pl.BlockSpec((OBS, GH), lambda i: (0, 0)),
            pl.BlockSpec((H, GH), lambda i: (0, 0)),
            pl.BlockSpec((1, GH), lambda i: (0, 0)),
            pl.BlockSpec((H, A), lambda i: (0, 0)),
            pl.BlockSpec((1, A), lambda i: (0, 0)),
        ],
        out_specs=pl.BlockSpec((tile_b, T * A), lambda i: (i, 0)),
    )
    out = pl.pallas_call(
        lstm_fc_kernel,
        out_shape=jax.ShapeDtypeStruct((b_pad, T * A), jnp.float32),
        grid_spec=grid_spec,
        compiler_params=pltpu.CompilerParams(
            dimension_semantics=("parallel",),  # batch tiles are independent
            vmem_limit_bytes=_VMEM_LIMIT_BYTES),
    )(*args)
    # Padded batch rows compute garbage but never interact with real rows;
    # they are sliced off here.
    return out[:B].reshape(B, T, A)


# ----------------------------- parameter init -------------------------------
def init_params(key, obs, act, hidden):
    ks = jax.random.split(key, 12)
    k_lin = 1.0 / jnp.sqrt(hidden)
    k_in = 1.0 / jnp.sqrt(obs)

    def u(k, shape, scale):
        return jax.random.uniform(k, shape, jnp.float32, -scale, scale)

    mlp = {
        "w1": u(ks[0], (hidden, obs), k_in),
        "b1": u(ks[1], (hidden,), k_in),
        "w2": u(ks[2], (hidden, hidden), k_lin),
        "b2": u(ks[3], (hidden,), k_lin),
        "w3": u(ks[4], (act, hidden), k_lin),
        "b3": u(ks[5], (act,), k_lin),
    }
    lstm = {
        "w_ih": u(ks[6], (4 * hidden, obs), k_lin),
        "w_hh": u(ks[7], (4 * hidden, hidden), k_lin),
        "b_ih": u(ks[8], (4 * hidden,), k_lin),
        "b_hh": u(ks[9], (4 * hidden,), k_lin),
        "w_fc": u(ks[10], (act, hidden), k_lin),
        "b_fc": u(ks[11], (act,), k_lin),
    }
    return mlp, lstm


# ----------------------------- pure-JAX references --------------------------
def mlp_ref(x, p):
    h1 = jnp.maximum(x @ p["w1"].T + p["b1"], 0.0)
    h2 = jnp.maximum(h1 @ p["w2"].T + p["b2"], 0.0)
    return h2 @ p["w3"].T + p["b3"]


def lstm_ref(x, p):
    B, T, _ = x.shape
    H = p["w_hh"].shape[1]
    b = p["b_ih"] + p["b_hh"]

    def step(carry, x_t):
        h, c = carry
        z = x_t @ p["w_ih"].T + h @ p["w_hh"].T + b
        i = jax.nn.sigmoid(z[:, 0 * H:1 * H])
        f = jax.nn.sigmoid(z[:, 1 * H:2 * H])
        g = jnp.tanh(z[:, 2 * H:3 * H])
        o = jax.nn.sigmoid(z[:, 3 * H:4 * H])
        c_new = f * c + i * g
        h_new = o * jnp.tanh(c_new)
        return (h_new, c_new), h_new

    xs = jnp.transpose(x, (1, 0, 2))
    (_, _), hs = lax.scan(step, (jnp.zeros((B, H)), jnp.zeros((B, H))), xs)
    out = jnp.transpose(hs, (1, 0, 2))  # (B, T, H)
    return out @ p["w_fc"].T + p["b_fc"]


if __name__ == "__main__":
    OBS, ACT, HIDDEN = 8, 4, 32
    B, T = 2, 8

    key = jax.random.PRNGKey(0)
    k_param, k_x1, k_x2, k_x3, k_x4 = jax.random.split(key, 5)
    mlp_params, lstm_params = init_params(k_param, OBS, ACT, HIDDEN)

    # linear=True path: x is (B, obs)
    x_lin = jax.random.normal(k_x1, (B, OBS), jnp.float32)
    q_lin = jax.block_until_ready(mlp_forward(x_lin, mlp_params))
    assert q_lin.shape == (B, ACT)
    assert jnp.allclose(q_lin, mlp_ref(x_lin, mlp_params), atol=1e-4, rtol=1e-4)

    # linear=False path (default): x is (B, T, obs), batch_first like PyTorch
    x_seq = jax.random.normal(k_x2, (B, T, OBS), jnp.float32)
    q_seq = jax.block_until_ready(lstm_forward(x_seq, lstm_params))
    assert q_seq.shape == (B, T, ACT)
    assert jnp.allclose(q_seq, lstm_ref(x_seq, lstm_params), atol=1e-4, rtol=1e-4)

    # Multi-tile batch (exercises padding + >=2 grid steps for v7x sharding).
    B2 = 20
    x_lin2 = jax.random.normal(k_x3, (B2, OBS), jnp.float32)
    q_lin2 = jax.block_until_ready(mlp_forward(x_lin2, mlp_params))
    assert jnp.allclose(q_lin2, mlp_ref(x_lin2, mlp_params), atol=1e-4, rtol=1e-4)

    x_seq2 = jax.random.normal(k_x4, (B2, T, OBS), jnp.float32)
    q_seq2 = jax.block_until_ready(lstm_forward(x_seq2, lstm_params))
    assert jnp.allclose(q_seq2, lstm_ref(x_seq2, lstm_params), atol=1e-4, rtol=1e-4)

    print("KERNEL_OK")
</pallas_src>

<mosaic_0001>
module attributes {stable_mosaic.version = 11 : i64} {
  func.func @mlp_kernel(%arg0: i32, %arg1: memref<8x8xf32, #tpu.memory_space<vmem>>, %arg2: memref<8x32xf32, #tpu.memory_space<vmem>>, %arg3: memref<1x32xf32, #tpu.memory_space<vmem>>, %arg4: memref<32x32xf32, #tpu.memory_space<vmem>>, %arg5: memref<1x32xf32, #tpu.memory_space<vmem>>, %arg6: memref<32x4xf32, #tpu.memory_space<vmem>>, %arg7: memref<1x4xf32, #tpu.memory_space<vmem>>, %arg8: memref<8x4xf32, #tpu.memory_space<vmem>>) attributes {dimension_semantics = [#tpu.dimension_semantics<parallel>], iteration_bounds = array<i64: 1>, scalar_prefetch = 0 : i64, scratch_operands = 0 : i64, tpu.core_type = #tpu.core_type<tc>, window_params = [{transform_indices = @transform_0, window_bounds = array<i64: 8, 8>}, {pipeline_mode = #tpu.pipeline_mode<synchronous>, transform_indices = @transform_1, window_bounds = array<i64: 8, 32>}, {pipeline_mode = #tpu.pipeline_mode<synchronous>, transform_indices = @transform_2, window_bounds = array<i64: 1, 32>}, {pipeline_mode = #tpu.pipeline_mode<synchronous>, transform_indices = @transform_3, window_bounds = array<i64: 32, 32>}, {pipeline_mode = #tpu.pipeline_mode<synchronous>, transform_indices = @transform_4, window_bounds = array<i64: 1, 32>}, {pipeline_mode = #tpu.pipeline_mode<synchronous>, transform_indices = @transform_5, window_bounds = array<i64: 32, 4>}, {pipeline_mode = #tpu.pipeline_mode<synchronous>, transform_indices = @transform_6, window_bounds = array<i64: 1, 4>}, {transform_indices = @transform_7, window_bounds = array<i64: 8, 4>}]} {
    %c0 = arith.constant 0 : index
    %c0_0 = arith.constant 0 : index
    %0 = vector.load %arg1[%c0, %c0_0] : memref<8x8xf32, #tpu.memory_space<vmem>>, vector<8x8xf32>
    %c0_1 = arith.constant 0 : index
    %c0_2 = arith.constant 0 : index
    %1 = vector.load %arg2[%c0_1, %c0_2] : memref<8x32xf32, #tpu.memory_space<vmem>>, vector<8x32xf32>
    %cst = arith.constant dense<0.000000e+00> : vector<8x32xf32>
    %2 = tpu.matmul %0, %1, %cst {dimension_numbers = #tpu.dot_dimension_numbers<[1], [0], [0], [1], [0, 0, 1, 1], [], []>} : vector<8x8xf32>, vector<8x32xf32>, vector<8x32xf32> -> vector<8x32xf32>
    %c0_3 = arith.constant 0 : index
    %c0_4 = arith.constant 0 : index
    %3 = vector.load %arg3[%c0_3, %c0_4] : memref<1x32xf32, #tpu.memory_space<vmem>>, vector<1x32xf32>
    %4 = vector.broadcast %3 : vector<1x32xf32> to vector<8x32xf32>
    %5 = arith.addf %2, %4 : vector<8x32xf32>
    %cst_5 = arith.constant 0.000000e+00 : f32
    %6 = vector.broadcast %cst_5 : f32 to vector<8x32xf32>
    %7 = arith.maximumf %5, %6 : vector<8x32xf32>
    %c0_6 = arith.constant 0 : index
    %c0_7 = arith.constant 0 : index
    %8 = vector.load %arg4[%c0_6, %c0_7] : memref<32x32xf32, #tpu.memory_space<vmem>>, vector<32x32xf32>
    %cst_8 = arith.constant dense<0.000000e+00> : vector<8x32xf32>
    %9 = tpu.matmul %7, %8, %cst_8 {dimension_numbers = #tpu.dot_dimension_numbers<[1], [0], [0], [1], [0, 0, 1, 1], [], []>} : vector<8x32xf32>, vector<32x32xf32>, vector<8x32xf32> -> vector<8x32xf32>
    %c0_9 = arith.constant 0 : index
    %c0_10 = arith.constant 0 : index
    %10 = vector.load %arg5[%c0_9, %c0_10] : memref<1x32xf32, #tpu.memory_space<vmem>>, vector<1x32xf32>
    %11 = vector.broadcast %10 : vector<1x32xf32> to vector<8x32xf32>
    %12 = arith.addf %9, %11 : vector<8x32xf32>
    %cst_11 = arith.constant 0.000000e+00 : f32
    %13 = vector.broadcast %cst_11 : f32 to vector<8x32xf32>
    %14 = arith.maximumf %12, %13 : vector<8x32xf32>
    %c0_12 = arith.constant 0 : index
    %c0_13 = arith.constant 0 : index
    %15 = vector.load %arg6[%c0_12, %c0_13] : memref<32x4xf32, #tpu.memory_space<vmem>>, vector<32x4xf32>
    %cst_14 = arith.constant dense<0.000000e+00> : vector<8x4xf32>
    %16 = tpu.matmul %14, %15, %cst_14 {dimension_numbers = #tpu.dot_dimension_numbers<[1], [0], [0], [1], [0, 0, 1, 1], [], []>} : vector<8x32xf32>, vector<32x4xf32>, vector<8x4xf32> -> vector<8x4xf32>
    %c0_15 = arith.constant 0 : index
    %c0_16 = arith.constant 0 : index
    %17 = vector.load %arg7[%c0_15, %c0_16] : memref<1x4xf32, #tpu.memory_space<vmem>>, vector<1x4xf32>
    %18 = vector.broadcast %17 : vector<1x4xf32> to vector<8x4xf32>
    %19 = arith.addf %16, %18 : vector<8x4xf32>
    %c0_17 = arith.constant 0 : index
    %c0_18 = arith.constant 0 : index
    %20 = vector.load %arg8[%c0_17, %c0_18] : memref<8x4xf32, #tpu.memory_space<vmem>>, vector<8x4xf32>
    tpu.vector_store %arg8[%c0_17, %c0_18], %19 {strides = array<i32>} : memref<8x4xf32, #tpu.memory_space<vmem>>, vector<8x4xf32>,
    return
  }
  func.func @transform_0(%arg0: i32) -> (i32, i32) {
    %c0_i32 = arith.constant 0 : i32
    %c0_i32_0 = arith.constant 0 : i32
    return %arg0, %c0_i32 : i32, i32
  }
  func.func @transform_1(%arg0: i32) -> (i32, i32) {
    %c0_i32 = arith.constant 0 : i32
    %c0_i32_0 = arith.constant 0 : i32
    %c0_i32_1 = arith.constant 0 : i32
    return %c0_i32, %c0_i32_0 : i32, i32
  }
  func.func @transform_2(%arg0: i32) -> (i32, i32) {
    %c0_i32 = arith.constant 0 : i32
    %c0_i32_0 = arith.constant 0 : i32
    %c0_i32_1 = arith.constant 0 : i32
    return %c0_i32, %c0_i32_0 : i32, i32
  }
  func.func @transform_3(%arg0: i32) -> (i32, i32) {
    %c0_i32 = arith.constant 0 : i32
    %c0_i32_0 = arith.constant 0 : i32
    %c0_i32_1 = arith.constant 0 : i32
    return %c0_i32, %c0_i32_0 : i32, i32
  }
  func.func @transform_4(%arg0: i32) -> (i32, i32) {
    %c0_i32 = arith.constant 0 : i32
    %c0_i32_0 = arith.constant 0 : i32
    %c0_i32_1 = arith.constant 0 : i32
    return %c0_i32, %c0_i32_0 : i32, i32
  }
  func.func @transform_5(%arg0: i32) -> (i32, i32) {
    %c0_i32 = arith.constant 0 : i32
    %c0_i32_0 = arith.constant 0 : i32
    %c0_i32_1 = arith.constant 0 : i32
    return %c0_i32, %c0_i32_0 : i32, i32
  }
  func.func @transform_6(%arg0: i32) -> (i32, i32) {
    %c0_i32 = arith.constant 0 : i32
    %c0_i32_0 = arith.constant 0 : i32
    %c0_i32_1 = arith.constant 0 : i32
    return %c0_i32, %c0_i32_0 : i32, i32
  }
  func.func @transform_7(%arg0: i32) -> (i32, i32) {
    %c0_i32 = arith.constant 0 : i32
    %c0_i32_0 = arith.constant 0 : i32
    return %arg0, %c0_i32 : i32, i32
  }
}

</mosaic_0001>

<llo_original>
// kernel: tpu_custom_call.1
$region0: #{tpu_custom_call.1}
  #allocation0 [shape = 'u32[]', space=smem, size = 0x4, offset = 0x4, fixed_abs, tag = 'smem constant byte address 0x4 - core index']
  #allocation1 [shape = 'u32[72,128]{1,0:T(1,128)}', space=vmem, size = 0x9000, scoped, tag = 'internal scratch']
  %s0 = inlined_call_operand.hbm [shape: f32[8,8], index: 0, kind: input, shape index: {}]
  %s1 = inlined_call_operand.hbm [shape: f32[8,32], index: 1, kind: input, shape index: {}]
  %s2 = inlined_call_operand.vmem [shape: f32[1,32], index: 2, kind: input, shape index: {}]
  %s3 = inlined_call_operand.vmem [shape: f32[32,32], index: 3, kind: input, shape index: {}]
  %s4 = inlined_call_operand.vmem [shape: f32[1,32], index: 4, kind: input, shape index: {}]
  %s5 = inlined_call_operand.vmem [shape: f32[32,4], index: 5, kind: input, shape index: {}]
  %s6 = inlined_call_operand.vmem [shape: f32[1,4], index: 6, kind: input, shape index: {}]
  %s7 = inlined_call_operand.vmem [shape: f32[8,4], index: 7, kind: output, shape index: {}]
  %s8 = sld [smem:[#allocation0]]
  $region46: #{tpu_custom_call.1} parent=0
    _
  %s10 = ssub.s32 1, %s8
  %s11 = scalar_select 0, %s10, %s8
  $region1: #{tpu_custom_call.1} parent=0
    #allocation2 [shape = 'u8[4096]{0}', space=vmem, size = 0x1000, scoped, tag = 'input window, operand 0, single buffered']
    #allocation3 [shape = 's32[1]{0}', space=sflag, size = 0x4, scoped, tag = 'scoped memory for tpu_custom_call.1']
    #allocation4 [shape = 'u8[4096]{0}', space=vmem, size = 0x1000, scoped, tag = 'input window, operand 1, single buffered']
    #allocation5 [shape = 's32[1]{0}', space=sflag, size = 0x4, scoped, tag = 'scoped memory for tpu_custom_call.1']
    %12 = vsyncpa [#allocation3], 0
    %13 = vsyncpa [#allocation5], 0
    // Predicated region
    $region2: #{tpu_custom_call.1} parent=1 // pred_check
      _
    $region3: #{tpu_custom_call.1} parent=1 // pred_check_branch
      %15 = sbr.rel (0) target = $region5
    $region4: #{tpu_custom_call.1} parent=1 // pred_region
      %17 = vsyncadd [#allocation3], 0
      %s19 = sshll.u32 %s0, 4
      %s20 = int_to_ptr.hbm [resolvable:$true] %s19
      %s21 = sshll.u32 [#allocation2], 4
      %s22 = int_to_ptr.vmem [resolvable:$true] %s21
      %24 = dma.hbm_to_vmem [thread:$0]  %s20, 128, %s22, [#allocation3]
    $region5: #{tpu_custom_call.1} parent=1 // pred_fallthru
      _
    // Predicated region
    $region6: #{tpu_custom_call.1} parent=1 // pred_check
      _
    $region7: #{tpu_custom_call.1} parent=1 // pred_check_branch
      %26 = sbr.rel (0) target = $region9
    $region8: #{tpu_custom_call.1} parent=1 // pred_region
      %28 = vsyncadd [#allocation5], 0
      %s30 = sshll.u32 %s1, 4
      %s31 = int_to_ptr.hbm [resolvable:$true] %s30
      %s32 = sshll.u32 [#allocation4], 4
      %s33 = int_to_ptr.vmem [resolvable:$true] %s32
      %35 = dma.hbm_to_vmem [thread:$0]  %s31, 128, %s33, [#allocation5]
    $region9: #{tpu_custom_call.1} parent=1 // pred_fallthru
      _
    // Predicated region
    $region10: #{tpu_custom_call.1} parent=1 // pred_check
      _
    $region11: #{tpu_custom_call.1} parent=1 // pred_check_branch
      %37 = sbr.rel (0) target = $region13
    $region12: #{tpu_custom_call.1} parent=1 // pred_region
      _
    $region13: #{tpu_custom_call.1} parent=1 // pred_fallthru
      _
    // Predicated region
    $region14: #{tpu_custom_call.1} parent=1 // pred_check
      _
    $region15: #{tpu_custom_call.1} parent=1 // pred_check_branch
      %39 = sbr.rel (0) target = $region17
    $region16: #{tpu_custom_call.1} parent=1 // pred_region
      _
    $region17: #{tpu_custom_call.1} parent=1 // pred_fallthru
      _
    // Predicated region
    $region18: #{tpu_custom_call.1} parent=1 // pred_check
      _
    $region19: #{tpu_custom_call.1} parent=1 // pred_check_branch
      %41 = sbr.rel (0) target = $region21
    $region20: #{tpu_custom_call.1} parent=1 // pred_region
      _
    $region21: #{tpu_custom_call.1} parent=1 // pred_fallthru
      _
    // Predicated region
    $region22: #{tpu_custom_call.1} parent=1 // pred_check
      _
    $region23: #{tpu_custom_call.1} parent=1 // pred_check_branch
      %43 = sbr.rel (0) target = $region25
    $region24: #{tpu_custom_call.1} parent=1 // pred_region
      _
    $region25: #{tpu_custom_call.1} parent=1 // pred_fallthru
      _
    // Predicated region
    $region26: #{tpu_custom_call.1} parent=1 // pred_check
      _
    $region27: #{tpu_custom_call.1} parent=1 // pred_check_branch
      %45 = sbr.rel (0) target = $region29
    $region28: #{tpu_custom_call.1} parent=1 // pred_region
      _
    $region29: #{tpu_custom_call.1} parent=1 // pred_fallthru
      _
    // Predicated region
    $region30: #{tpu_custom_call.1} parent=1 // pred_check
      _
    $region31: #{tpu_custom_call.1} parent=1 // pred_check_branch
      %47 = sbr.rel (0) target = $region33
    $region32: #{tpu_custom_call.1} parent=1 // pred_region
      %49 = dma.done [#allocation3], 128
    $region33: #{tpu_custom_call.1} parent=1 // pred_fallthru
      _
    // Predicated region
    $region34: #{tpu_custom_call.1} parent=1 // pred_check
      _
    $region35: #{tpu_custom_call.1} parent=1 // pred_check_branch
      %51 = sbr.rel (0) target = $region37
    $region36: #{tpu_custom_call.1} parent=1 // pred_region
      %53 = dma.done [#allocation5], 128
    $region37: #{tpu_custom_call.1} parent=1 // pred_fallthru
      _
    %v54 = vld [vmem:[#allocation2] sm:$0xff]
    %v55 = vld [vmem:[#allocation4] sm:$0xff]
    %v56 = vld [vmem:[%s2] sm:$0x1]
    %v58 = vperm.slane %v56, 0
    %vm60 = vcmask 64512
    %v62 = vsel %vm60, %v54, 0
    %64 = vmatpush.msra.mxu0 0.0
    %65 = vmatpush.msra.mxu0 0.0
    %66 = vmatpush.msra.mxu0 0.0
    %67 = vmatpush.msra.mxu0 0.0
    %68 = vmatpush.msra.mxu0 0.0
    %69 = vmatpush.msra.mxu0 0.0
    %70 = vmatpush.msra.mxu0 0.0
    %71 = vmatpush.msra.mxu0 0.0
    %72 = vmatpush.msra.mxu0 0.0
    %73 = vmatpush.msra.mxu0 0.0
    %74 = vmatpush.msra.mxu0 0.0
    %75 = vmatpush.msra.mxu0 0.0
    %76 = vmatpush.msra.mxu0 0.0
    %77 = vmatpush.msra.mxu0 0.0
    %78 = vmatpush.msra.mxu0 0.0
    %79 = vmatpush.msra.mxu0 %v55
    %80 = vmatmul.f32.gmra.mxu0 %v62
    %v81 = vpop.f32.mrf.mxu0
    %v82 = vadd.f32 %v58, %v81
    %83 = vdwg.mxu0
    %v84 = vmax.f32 %v82, 0.0
    %v85 = vld [vmem:[%s3] sm:$0xff]
    %v86 = vld [vmem:[%s3 + $0x8] sm:$0xff]
    %v87 = vld [vmem:[%s3 + $0x10] sm:$0xff]
    %v88 = vld [vmem:[%s3 + $0x18] sm:$0xff]
    %v89 = vld [vmem:[%s4] sm:$0x1]
    %v91 = vperm.slane %v89, 0
    %vm93 = vcmask 261120
    %v95 = vsel %vm93, %v84, 0
    %97 = vmatpush.msra.mxu0 0.0
    %98 = vmatpush.msra.mxu0 0.0
    %99 = vmatpush.msra.mxu0 0.0
    %100 = vmatpush.msra.mxu0 0.0
    %101 = vmatpush.msra.mxu0 0.0
    %102 = vmatpush.msra.mxu0 0.0
    %103 = vmatpush.msra.mxu0 0.0
    %104 = vmatpush.msra.mxu0 0.0
    %105 = vmatpush.msra.mxu0 0.0
    %106 = vmatpush.msra.mxu0 0.0
    %107 = vmatpush.msra.mxu0 0.0
    %108 = vmatpush.msra.mxu0 0.0
    %109 = vmatpush.msra.mxu0 %v88
    %110 = vmatpush.msra.mxu0 %v87
    %111 = vmatpush.msra.mxu0 %v86
    %112 = vmatpush.msra.mxu0 %v85
    %113 = vmatmul.f32.gmra.mxu0 %v95
    %v114 = vpop.f32.mrf.mxu0
    %v115 = vadd.f32 %v91, %v114
    %116 = vdwg.mxu0
    %v117 = vmax.f32 %v115, 0.0
    %v118 = vld [vmem:[%s5] sm:$0xff]
    %v119 = vld [vmem:[%s5 + $0x8] sm:$0xff]
    %v120 = vld [vmem:[%s5 + $0x10] sm:$0xff]
    %v121 = vld [vmem:[%s5 + $0x18] sm:$0xff]
    %v122 = vld [vmem:[%s6] sm:$0x1]
    %v124 = vperm.slane %v122, 0
    %v127 = vsel %vm93, %v117, 0
    %129 = vmatpush.msra.mxu0 0.0
    %130 = vmatpush.msra.mxu0 0.0
    %131 = vmatpush.msra.mxu0 0.0
    %132 = vmatpush.msra.mxu0 0.0
    %133 = vmatpush.msra.mxu0 0.0
    %134 = vmatpush.msra.mxu0 0.0
    %135 = vmatpush.msra.mxu0 0.0
    %136 = vmatpush.msra.mxu0 0.0
    %137 = vmatpush.msra.mxu0 0.0
    %138 = vmatpush.msra.mxu0 0.0
    %139 = vmatpush.msra.mxu0 0.0
    %140 = vmatpush.msra.mxu0 0.0
    %141 = vmatpush.msra.mxu0 %v121
    %142 = vmatpush.msra.mxu0 %v120
    %143 = vmatpush.msra.mxu0 %v119
    %144 = vmatpush.msra.mxu0 %v118
    %145 = vmatmul.f32.gmra.mxu0 %v127
    %v146 = vpop.f32.mrf.mxu0
    %v147 = vadd.f32 %v124, %v146
    %148 = vdwg.mxu0
    %vm149 = vcmask 31744
    %150 = vst.msk [vmem:[%s7] sm:$0xff] %vm149, %v147
    // Predicated region
    $region38: #{tpu_custom_call.1} parent=1 // pred_check
      _
    $region39: #{tpu_custom_call.1} parent=1 // pred_check_branch
      %152 = sbr.rel (0) target = $region41
    $region40: #{tpu_custom_call.1} parent=1 // pred_region
      _
    $region41: #{tpu_custom_call.1} parent=1 // pred_fallthru
      _
    // Predicated region
    $region42: #{tpu_custom_call.1} parent=1 // pred_check
      _
    $region43: #{tpu_custom_call.1} parent=1 // pred_check_branch
      %154 = sbr.rel (0) target = $region45
    $region44: #{tpu_custom_call.1} parent=1 // pred_region
      _
    $region45: #{tpu_custom_call.1} parent=1 // pred_fallthru
      _
    %155 = vsyncpa [#allocation3], 1
    %156 = vsyncpa [#allocation5], 1

</llo_original>
